<compile_context>
chip_gen: v7x
topology: tpu7x:2x2x1
jax: 0.10.0
libtpu: 0.0.40
codegen_flags: <defaults>
</compile_context>

<pallas_src>
import jax
import jax.numpy as jnp
from jax import lax
from jax.experimental import pallas as pl
from jax.experimental.pallas import tpu as pltpu


def _round_up(x: int, m: int) -> int:
    return ((x + m - 1) // m) * m


def _cdiv(a: int, b: int) -> int:
    return (a + b - 1) // b


def _vmem_budget_bytes() -> int:
    """Per-generation VMEM tile budget (leaves headroom for Mosaic scratch)."""
    try:
        cap = pltpu.get_tpu_info().vmem_capacity_bytes
    except Exception:  # unknown chip / interpret mode -> be conservative
        cap = 64 << 20
    if cap >= (128 << 20):      # v5e / v6e: 128 MiB physical VMEM
        return 56 << 20
    return 24 << 20             # v7x: 64 MiB physical VMEM


# ------------------------------- kernels ----------------------------------- #

def _linear_nobias_kernel(x_ref, w_ref, o_ref):
    # x_ref: (tm, K); w_ref: (tn, K) in PyTorch (out, in) layout; o_ref: (tm, tn)
    # Contract last dim of both operands: y[m, n] = sum_k x[m, k] * w[n, k]
    # (== x @ W.T) -> feeds the MXU directly, no in-kernel transpose.
    o_ref[...] = lax.dot_general(
        x_ref[...], w_ref[...],
        dimension_numbers=(((1,), (1,)), ((), ())),
        preferred_element_type=jnp.float32,
    ).astype(o_ref.dtype)


def _linear_nobias_kacc_kernel(x_ref, w_ref, o_ref, acc_ref):
    # K-tiled variant: grid = (n, m, k), k innermost ("arbitrary"), f32 acc.
    k = pl.program_id(2)

    @pl.when(k == 0)
    def _():
        acc_ref[...] = jnp.zeros_like(acc_ref)

    acc_ref[...] += lax.dot_general(
        x_ref[...], w_ref[...],
        dimension_numbers=(((1,), (1,)), ((), ())),
        preferred_element_type=jnp.float32,
    )

    @pl.when(k == pl.num_programs(2) - 1)
    def _():
        o_ref[...] = acc_ref[...].astype(o_ref.dtype)


# ------------------------------- wrapper ------------------------------------ #

def speaker_classification_head(x, weight, *, allow_fast_path=True):
    """y = x @ weight.T (nn.Linear, bias=False, PyTorch (out, in) weight layout).

    x: (B, spk_emb), weight: (num_spk, spk_emb)  ->  (B, num_spk)
    """
    B, K = x.shape
    N, Kw = weight.shape
    assert K == Kw, (K, Kw)
    out_dtype = x.dtype
    itemsize = 4  # f32

    # Fast path: at tiny deployed shapes the pallas_call boundary dominates the
    # ~1K MACs of real work; let XLA fuse the dot with its producer instead.
    if allow_fast_path and (B * N * K) <= (1 << 18):
        return lax.dot_general(
            x, weight, (((1,), (1,)), ((), ())),
            preferred_element_type=jnp.float32).astype(out_dtype)

    budget = _vmem_budget_bytes()

    # Batch tile: full dim when it fits in one tile (a block dim equal to the
    # full array dim need not be (8,128)-aligned -> no padding).
    tm = B if B <= 128 else 128

    def tiles_bytes(tm_, tn_, k_, acc=False):
        # 2x-buffered x & out, 3x-buffered weight (prefetch depth), + accumulator.
        b = itemsize * (2 * tm_ * k_ + 3 * tn_ * k_ + 2 * tm_ * tn_)
        if acc:
            b += itemsize * tm_ * tn_
        return b

    # Speaker (output) tile: lane-dense multiple of 128 when tiling, or the
    # full dim when num_spk < 128; as large as the VMEM budget allows.
    if N <= 128:
        tn = N
    else:
        tn = min(_round_up(N, 128), 2048)
        while tn > 128 and tiles_bytes(tm, tn, K) > budget:
            tn = max(128, _round_up(tn // 2, 128))

    grid_m = _cdiv(B, tm)
    grid_n = _cdiv(N, tn)

    # v7x megacore: avoid a (1, 1) grid when there is enough work to split.
    if grid_m == 1 and grid_n == 1 and N >= 256:
        tn = _round_up(_cdiv(N, 2), 128)
        grid_n = _cdiv(N, tn)

    use_k_axis = False
    if tiles_bytes(tm, tn, K) > budget:
        # Shrink the batch tile first (keep it a multiple of 8).
        while tm > 8 and tiles_bytes(tm, tn, K) > budget:
            tm = max(8, (tm // 2) // 8 * 8)
        grid_m = _cdiv(B, tm)
        if tiles_bytes(tm, tn, K) > budget:
            use_k_axis = True

    if not use_k_axis:
        # Speaker axis outermost, batch axis innermost -> weight tile resident
        # across all batch tiles; x tile resident when grid_m == 1.
        grid = (grid_n, grid_m)
        x_spec = pl.BlockSpec((tm, K), lambda j, i: (i, 0))
        if grid_n >= 2:
            try:
                w_spec = pl.BlockSpec((tn, K), lambda j, i: (j, 0),
                                      pipeline_mode=pl.Buffered(3))
            except TypeError:  # pipeline_mode unsupported -> default 2-deep
                w_spec = pl.BlockSpec((tn, K), lambda j, i: (j, 0))
        else:
            w_spec = pl.BlockSpec((tn, K), lambda j, i: (j, 0))
        in_specs = [x_spec, w_spec]
        out_spec = pl.BlockSpec((tm, tn), lambda j, i: (i, j))
        scratch = []
        kernel = _linear_nobias_kernel
        dims = ("parallel", "parallel")
        vmem_need = tiles_bytes(tm, tn, K)
        # Real traffic: weight read once, x re-read per speaker tile, out once.
        bytes_accessed = itemsize * (N * K + grid_n * B * K + B * N)
        flops = 2 * B * N * K
        operands = (x, weight)
    else:
        # Rare fallback (huge spk_emb): K-reduction grid axis with accumulator.
        # Only this path zero-pads K (zeros are matmul-safe).
        tk = 2048
        while tk > 128 and tiles_bytes(tm, tn, tk, acc=True) > budget:
            tk //= 2
        Kp = _round_up(K, tk)
        x_p = jnp.pad(x, ((0, 0), (0, Kp - K))) if Kp != K else x
        w_p = jnp.pad(weight, ((0, 0), (0, Kp - K))) if Kp != K else weight
        grid_k = Kp // tk
        grid = (grid_n, grid_m, grid_k)
        in_specs = [
            pl.BlockSpec((tm, tk), lambda j, i, k: (i, k)),
            pl.BlockSpec((tn, tk), lambda j, i, k: (j, k)),
        ]
        out_spec = pl.BlockSpec((tm, tn), lambda j, i, k: (i, j))
        scratch = [pltpu.VMEM((tm, tn), jnp.float32)]
        kernel = _linear_nobias_kacc_kernel
        dims = ("parallel", "parallel", "arbitrary")
        vmem_need = tiles_bytes(tm, tn, tk, acc=True)
        bytes_accessed = itemsize * (grid_m * N * Kp + grid_n * B * Kp + B * N)
        flops = 2 * B * N * Kp
        operands = (x_p, w_p)

    out = pl.pallas_call(
        kernel,
        out_shape=jax.ShapeDtypeStruct((B, N), out_dtype),
        grid=grid,
        in_specs=in_specs,
        out_specs=out_spec,
        scratch_shapes=scratch,
        compiler_params=pltpu.CompilerParams(
            dimension_semantics=dims,
            vmem_limit_bytes=int(max(vmem_need + (2 << 20), 16 << 20)),
        ),
        cost_estimate=pl.CostEstimate(
            flops=flops, transcendentals=0, bytes_accessed=bytes_accessed),
    )(*operands)

    return out


if __name__ == "__main__":
    key = jax.random.PRNGKey(0)
    kx, kw, kx2, kw2 = jax.random.split(key, 4)

    # Shapes consistent with the module: batch=2, spk_emb=32, num_spk=16.
    B, SPK_EMB, NUM_SPK = 2, 32, 16
    x = jax.random.normal(kx, (B, SPK_EMB), dtype=jnp.float32)
    weight = jax.random.normal(kw, (NUM_SPK, SPK_EMB), dtype=jnp.float32) * 0.1

    # 1) Force the Pallas kernel at the module's small shapes (no pad/slice:
    #    all block dims equal the full array extents).
    y = speaker_classification_head(x, weight, allow_fast_path=False)
    jax.block_until_ready(y)
    y_ref = x @ weight.T
    assert y.shape == (B, NUM_SPK)
    assert jnp.allclose(y, y_ref, atol=1e-5, rtol=1e-5)

    # 2) Default path (small-shape fast path) must match too.
    y_fast = speaker_classification_head(x, weight)
    jax.block_until_ready(y_fast)
    assert jnp.allclose(y_fast, y_ref, atol=1e-5, rtol=1e-5)

    # 3) Non-aligned multi-tile shape exercising padding-free tiling
    #    (partial edge blocks + weight-resident grid order).
    B2, K2, N2 = 9, 96, 300
    x2 = jax.random.normal(kx2, (B2, K2), dtype=jnp.float32)
    w2 = jax.random.normal(kw2, (N2, K2), dtype=jnp.float32) * 0.05
    y2 = speaker_classification_head(x2, w2, allow_fast_path=False)
    jax.block_until_ready(y2)
    y2_ref = x2 @ w2.T
    assert y2.shape == (B2, N2)
    assert jnp.allclose(y2, y2_ref, atol=1e-4, rtol=1e-4)

    print("KERNEL_OK")
</pallas_src>

<mosaic_0001>
module attributes {stable_mosaic.version = 11 : i64} {
  func.func @_linear_nobias_kernel(%arg0: i32, %arg1: i32, %arg2: memref<2x32xf32, #tpu.memory_space<vmem>>, %arg3: memref<16x32xf32, #tpu.memory_space<vmem>>, %arg4: memref<2x16xf32, #tpu.memory_space<vmem>>) attributes {dimension_semantics = [#tpu.dimension_semantics<parallel>, #tpu.dimension_semantics<parallel>], iteration_bounds = array<i64: 1, 1>, scalar_prefetch = 0 : i64, scratch_operands = 0 : i64, tpu.core_type = #tpu.core_type<tc>, window_params = [{transform_indices = @transform_0, window_bounds = array<i64: 2, 32>}, {transform_indices = @transform_1, window_bounds = array<i64: 16, 32>}, {transform_indices = @transform_2, window_bounds = array<i64: 2, 16>}]} {
    %c0 = arith.constant 0 : index
    %c0_0 = arith.constant 0 : index
    %0 = vector.load %arg2[%c0, %c0_0] : memref<2x32xf32, #tpu.memory_space<vmem>>, vector<2x32xf32>
    %c0_1 = arith.constant 0 : index
    %c0_2 = arith.constant 0 : index
    %1 = vector.load %arg3[%c0_1, %c0_2] : memref<16x32xf32, #tpu.memory_space<vmem>>, vector<16x32xf32>
    %cst = arith.constant dense<0.000000e+00> : vector<2x16xf32>
    %2 = tpu.matmul %0, %1, %cst {dimension_numbers = #tpu.dot_dimension_numbers<[1], [1], [0], [0], [0, 0, 1, 0], [], []>} : vector<2x32xf32>, vector<16x32xf32>, vector<2x16xf32> -> vector<2x16xf32>
    %c0_3 = arith.constant 0 : index
    %c0_4 = arith.constant 0 : index
    %3 = vector.load %arg4[%c0_3, %c0_4] : memref<2x16xf32, #tpu.memory_space<vmem>>, vector<2x16xf32>
    tpu.vector_store %arg4[%c0_3, %c0_4], %2 {strides = array<i32>} : memref<2x16xf32, #tpu.memory_space<vmem>>, vector<2x16xf32>,
    return
  }
  func.func @transform_0(%arg0: i32, %arg1: i32) -> (i32, i32) {
    %c0_i32 = arith.constant 0 : i32
    %c0_i32_0 = arith.constant 0 : i32
    return %arg1, %c0_i32 : i32, i32
  }
  func.func @transform_1(%arg0: i32, %arg1: i32) -> (i32, i32) {
    %c0_i32 = arith.constant 0 : i32
    %c0_i32_0 = arith.constant 0 : i32
    return %arg0, %c0_i32 : i32, i32
  }
  func.func @transform_2(%arg0: i32, %arg1: i32) -> (i32, i32) {
    %c0_i32 = arith.constant 0 : i32
    return %arg1, %arg0 : i32, i32
  }
}

</mosaic_0001>

<llo_original>
// kernel: tpu_custom_call.1
$region0: #{tpu_custom_call.1}
  #allocation0 [shape = 'u32[]', space=smem, size = 0x4, offset = 0x4, fixed_abs, tag = 'smem constant byte address 0x4 - core index']
  #allocation1 [shape = 'u32[144,128]{1,0:T(1,128)}', space=vmem, size = 0x12000, scoped, tag = 'internal scratch']
  %s0 = inlined_call_operand.hbm [shape: f32[2,32], index: 0, kind: input, shape index: {}]
  %s1 = inlined_call_operand.hbm [shape: f32[16,32], index: 1, kind: input, shape index: {}]
  %s2 = inlined_call_operand.hbm [shape: f32[2,16], index: 2, kind: output, shape index: {}]
  %s3 = sld [smem:[#allocation0]]
  $region26: #{tpu_custom_call.1} parent=0
    _
  %s5 = ssub.s32 1, %s3
  %s6 = scalar_select 0, %s5, %s3
  $region1: #{tpu_custom_call.1} parent=0
    #allocation2 [shape = 'u8[1024]{0}', space=vmem, size = 0x400, scoped, tag = 'input window, operand 0, single buffered']
    #allocation3 [shape = 's32[1]{0}', space=sflag, size = 0x4, scoped, tag = 'scoped memory for tpu_custom_call.1']
    #allocation4 [shape = 's32[1]{0}', space=sflag, size = 0x4, scoped, tag = 'scoped memory for tpu_custom_call.1']
    #allocation5 [shape = 'u8[8192]{0}', space=vmem, size = 0x2000, scoped, tag = 'input window, operand 1, single buffered']
    #allocation6 [shape = 's32[1]{0}', space=sflag, size = 0x4, scoped, tag = 'scoped memory for tpu_custom_call.1']
    #allocation7 [shape = 'u8[1024]{0}', space=vmem, size = 0x400, scoped, tag = 'output window, operand 0, single buffered']
    %7 = vsyncpa [#allocation3], 0
    %8 = vsyncpa [#allocation6], 0
    %9 = vsyncpa [#allocation4], 0
    // Predicated region
    $region2: #{tpu_custom_call.1} parent=1 // pred_check
      _
    $region3: #{tpu_custom_call.1} parent=1 // pred_check_branch
      %11 = sbr.rel (0) target = $region5
    $region4: #{tpu_custom_call.1} parent=1 // pred_region
      %s13 = ssub.s32 32, 32
      %14 = vsyncadd [#allocation3], %s13
      %s16 = sshll.u32 [#allocation2], 4
      %s17 = int_to_ptr.vmem [resolvable:$true] %s16
      %19 = dma.hbm_to_vmem [thread:$0]  %s0, 32, %s17, [#allocation3]
    $region5: #{tpu_custom_call.1} parent=1 // pred_fallthru
      _
    // Predicated region
    $region6: #{tpu_custom_call.1} parent=1 // pred_check
      _
    $region7: #{tpu_custom_call.1} parent=1 // pred_check_branch
      %21 = sbr.rel (0) target = $region9
    $region8: #{tpu_custom_call.1} parent=1 // pred_region
      %s23 = ssub.s32 256, 256
      %24 = vsyncadd [#allocation6], %s23
      %s25 = sshll.u32 [#allocation5], 4
      %s26 = int_to_ptr.vmem [resolvable:$true] %s25
      %31 = dma.hbm_to_vmem [thread:$0]  %s1, 256, %s26, [#allocation6], 128, 128, 8
    $region9: #{tpu_custom_call.1} parent=1 // pred_fallthru
      _
    // Predicated region
    $region10: #{tpu_custom_call.1} parent=1 // pred_check
      _
    $region11: #{tpu_custom_call.1} parent=1 // pred_check_branch
      %33 = sbr.rel (0) target = $region13
    $region12: #{tpu_custom_call.1} parent=1 // pred_region
      %34 = dma.done [#allocation3], 32
    $region13: #{tpu_custom_call.1} parent=1 // pred_fallthru
      _
    // Predicated region
    $region14: #{tpu_custom_call.1} parent=1 // pred_check
      _
    $region15: #{tpu_custom_call.1} parent=1 // pred_check_branch
      %36 = sbr.rel (0) target = $region17
    $region16: #{tpu_custom_call.1} parent=1 // pred_region
      %37 = dma.done [#allocation6], 256
    $region17: #{tpu_custom_call.1} parent=1 // pred_fallthru
      _
    %v38 = vld [vmem:[#allocation2] sm:$0x3]
    %v39 = vld [vmem:[#allocation5] sm:$0xff]
    %v40 = vld [vmem:[#allocation5 + $0x8] sm:$0xff]
    %vm41 = vcmask 261120
    %v43 = vsel %vm41, %v38, 0
    %v46 = vsel %vm41, %v39, 0
    %v49 = vsel %vm41, %v40, 0
    %51 = vmatprep.subr.mxu0 0.0
    %52 = vmatpush1.xpose.msra.mxu0 %v46
    %53 = vmatprep.subr.mxu0 0.0
    %54 = vmatpush1.xpose.msra.mxu0 %v49
    %55 = vmatprep.subr.mxu0 0.0
    %56 = vmatpush1.xpose.msra.mxu0 0.0
    %57 = vmatprep.subr.mxu0 0.0
    %58 = vmatpush1.xpose.msra.mxu0 0.0
    %59 = vmatprep.subr.mxu0 0.0
    %60 = vmatpush1.xpose.msra.mxu0 0.0
    %61 = vmatprep.subr.mxu0 0.0
    %62 = vmatpush1.xpose.msra.mxu0 0.0
    %63 = vmatprep.subr.mxu0 0.0
    %64 = vmatpush1.xpose.msra.mxu0 0.0
    %65 = vmatprep.subr.mxu0 0.0
    %66 = vmatpush1.xpose.msra.mxu0 0.0
    %67 = vmatprep.subr.mxu0 0.0
    %68 = vmatpush1.xpose.msra.mxu0 0.0
    %69 = vmatprep.subr.mxu0 0.0
    %70 = vmatpush1.xpose.msra.mxu0 0.0
    %71 = vmatprep.subr.mxu0 0.0
    %72 = vmatpush1.xpose.msra.mxu0 0.0
    %73 = vmatprep.subr.mxu0 0.0
    %74 = vmatpush1.xpose.msra.mxu0 0.0
    %75 = vmatprep.subr.mxu0 0.0
    %76 = vmatpush1.xpose.msra.mxu0 0.0
    %77 = vmatprep.subr.mxu0 0.0
    %78 = vmatpush1.xpose.msra.mxu0 0.0
    %79 = vmatprep.subr.mxu0 0.0
    %80 = vmatpush1.xpose.msra.mxu0 0.0
    %81 = vmatprep.subr.mxu0 0.0
    %82 = vmatpush1.xpose.msra.mxu0 0.0
    %83 = vmatprep.subr.mxu0 0.0
    %84 = vmatpush1.xpose.msra.mxu0 0.0
    %85 = vmatprep.subr.mxu0 0.0
    %86 = vmatpush1.xpose.msra.mxu0 0.0
    %87 = vmatprep.subr.mxu0 0.0
    %88 = vmatpush1.xpose.msra.mxu0 0.0
    %89 = vmatprep.subr.mxu0 0.0
    %90 = vmatpush1.xpose.msra.mxu0 0.0
    %91 = vmatprep.subr.mxu0 0.0
    %92 = vmatpush1.xpose.msra.mxu0 0.0
    %93 = vmatprep.subr.mxu0 0.0
    %94 = vmatpush1.xpose.msra.mxu0 0.0
    %95 = vmatprep.subr.mxu0 0.0
    %96 = vmatpush1.xpose.msra.mxu0 0.0
    %97 = vmatprep.subr.mxu0 0.0
    %98 = vmatpush1.xpose.msra.mxu0 0.0
    %99 = vmatprep.subr.mxu0 0.0
    %100 = vmatpush1.xpose.msra.mxu0 0.0
    %101 = vmatprep.subr.mxu0 0.0
    %102 = vmatpush1.xpose.msra.mxu0 0.0
    %103 = vmatprep.subr.mxu0 0.0
    %104 = vmatpush1.xpose.msra.mxu0 0.0
    %105 = vmatprep.subr.mxu0 0.0
    %106 = vmatpush1.xpose.msra.mxu0 0.0
    %107 = vmatprep.subr.mxu0 0.0
    %108 = vmatpush1.xpose.msra.mxu0 0.0
    %109 = vmatprep.subr.mxu0 0.0
    %110 = vmatpush1.xpose.msra.mxu0 0.0
    %111 = vmatprep.subr.mxu0 0.0
    %112 = vmatpush1.xpose.msra.mxu0 0.0
    %113 = vmatprep.subr.mxu0 0.0
    %114 = vmatpush1.xpose.msra.mxu0 0.0
    %115 = vmatprep.mubr.f32.mxu0 0.0
    %116 = vmatmul.mubr.f32.gmra.mrb[0].mxu0 %v43
    %v117 = vpop.f32.mrb[0].mxu0
    %v118 = vadd.f32 0.0, %v117
    %v119 = vpop.f32.mrb[0].mxu0
    %120 = vdwg.mxu0
    %vm121 = vcmask 123904
    %122 = vst.msk [vmem:[#allocation7] sm:$0x3] %vm121, %v118
    // Predicated region
    $region18: #{tpu_custom_call.1} parent=1 // pred_check
      _
    $region19: #{tpu_custom_call.1} parent=1 // pred_check_branch
      %124 = sbr.rel (0) target = $region21
    $region20: #{tpu_custom_call.1} parent=1 // pred_region
      %s126 = ssub.s32 32, 32
      %127 = vsyncadd [#allocation4], %s126
      %s129 = sshll.u32 [#allocation7], 4
      %s130 = int_to_ptr.vmem [resolvable:$true] %s129
      %132 = dma.vmem_to_hbm [thread:$0]  %s130, 32, %s2, [#allocation4]
    $region21: #{tpu_custom_call.1} parent=1 // pred_fallthru
      _
    // Predicated region
    $region22: #{tpu_custom_call.1} parent=1 // pred_check
      _
    $region23: #{tpu_custom_call.1} parent=1 // pred_check_branch
      %134 = sbr.rel (0) target = $region25
    $region24: #{tpu_custom_call.1} parent=1 // pred_region
      %135 = dma.done [#allocation4], 32
    $region25: #{tpu_custom_call.1} parent=1 // pred_fallthru
      _
    %136 = vsyncpa [#allocation3], 1
    %137 = vsyncpa [#allocation6], 1
    %138 = vsyncpa [#allocation4], 1

</llo_original>
